<compile_context>
chip_gen: v6e
topology: v6e:2x2x1
jax: 0.10.0
libtpu: 0.0.40
codegen_flags: <defaults>
</compile_context>

<pallas_src>
from functools import partial

import jax
import jax.numpy as jnp
from jax.experimental import pallas as pl
from jax.experimental.pallas import tpu as pltpu


# ---------------------------------------------------------------------------
# Kernel bodies
# ---------------------------------------------------------------------------

def _attention_from_pooled(pooled, w1_ref, b1_ref, w2_ref, b2_ref,
                           radix, channels):
    """GAP(sum-of-splits) -> fc1(+folded BN)+ReLU -> fc2 -> softmax(radix).

    `pooled` is the per-channel spatial mean, shape (bt, radix*channels), f32.
    Returns the attention map, shape (bt, radix*channels), f32.
    """
    # Sum of the radix splits (unrolled static slices; radix is small).
    gap = pooled[:, 0:channels]
    for r in range(1, radix):
        gap = gap + pooled[:, r * channels:(r + 1) * channels]

    # fc1 (1x1 conv == matmul) with BatchNorm folded in, then ReLU.
    # TODO(synk): BatchNorm is eval-mode only (running stats folded into the
    # fc1 weight/bias wrapper-side); training-mode batch stats not reproduced.
    h = jnp.dot(gap, w1_ref[...], preferred_element_type=jnp.float32) + b1_ref[...]
    h = jnp.maximum(h, 0.0)

    # fc2 -> logits; softmax over the radix axis via unrolled slices
    # (avoids a lane<->sublane relayout from reshape(bt, radix, channels)).
    logits = jnp.dot(h, w2_ref[...], preferred_element_type=jnp.float32) + b2_ref[...]
    chunks = [logits[:, r * channels:(r + 1) * channels] for r in range(radix)]
    m = chunks[0]
    for ch in chunks[1:]:
        m = jnp.maximum(m, ch)
    exps = [jnp.exp(ch - m) for ch in chunks]
    denom = exps[0]
    for e in exps[1:]:
        denom = denom + e
    inv = 1.0 / denom                       # exact; tiny, off the critical path
    return jnp.concatenate([e * inv for e in exps], axis=-1)


def sams_fused_kernel(x_ref, w1_ref, b1_ref, w2_ref, b2_ref, o_ref, *,
                      radix, channels):
    """Single-pass kernel: whole (bt, C, HW) sample tile resident in VMEM."""
    hw = x_ref.shape[-1]
    # GAP: spatial (lane) reduction with f32 accumulation.
    pooled = jnp.sum(x_ref[...], axis=-1, dtype=jnp.float32) * (1.0 / hw)
    att = _attention_from_pooled(pooled, w1_ref, b1_ref, w2_ref, b2_ref,
                                 radix, channels).astype(o_ref.dtype)
    # Re-read x_ref: keeps the final pass a clean vld->vmul->vst stream and
    # avoids holding the whole multi-MiB tile live across the attention chain.
    o_ref[...] = x_ref[...] * att[:, :, None]


def sams_att_kernel(x_ref, w1_ref, b1_ref, w2_ref, b2_ref, att_ref, pool_acc,
                    *, radix, channels, hw_total):
    """Split-path pass 1: accumulate GAP across spatial tiles, compute the
    attention map on the last spatial tile."""
    hi = pl.program_id(1)

    @pl.when(hi == 0)
    def _():
        pool_acc[...] = jnp.zeros_like(pool_acc)

    pool_acc[...] += jnp.sum(x_ref[...], axis=-1, dtype=jnp.float32)

    @pl.when(hi == pl.num_programs(1) - 1)
    def _():
        pooled = pool_acc[...] * (1.0 / hw_total)
        att = _attention_from_pooled(pooled, w1_ref, b1_ref, w2_ref, b2_ref,
                                     radix, channels)
        att_ref[...] = att[:, :, None].astype(att_ref.dtype)


def sams_apply_kernel(att_ref, x_ref, o_ref):
    """Split-path pass 2: stream x and apply the per-(batch, channel) scale."""
    o_ref[...] = x_ref[...] * att_ref[...]


# ---------------------------------------------------------------------------
# Tiling / VMEM sizing
# ---------------------------------------------------------------------------

def _vmem_limit_bytes():
    """Per-generation scoped VMEM limit: ~75% of physical, capped at 100 MiB.
    v5e/v6e (128 MiB) -> 96 MiB; v7x (64 MiB) -> 48 MiB; unknown -> 48 MiB."""
    try:
        phys = int(pltpu.get_tpu_info().vmem_capacity_bytes)
    except Exception:
        phys = 64 * 1024 * 1024
    return int(max(32 * 1024 * 1024, min(phys * 3 // 4, 100 * 1024 * 1024)))


def _pick_block_b(batch, bytes_per_sample, x_budget_bytes,
                  target_bytes=8 << 20, min_steps=4):
    """Largest batch tile that (a) targets ~target_bytes of input per step,
    (b) keeps ~4x the tile (in + out, double-buffered) within the VMEM budget
    and (c) leaves >= min_steps grid steps (>= 2 per TC on v7x), preferring
    an even step count so the two TensorCores stay balanced."""
    bps = max(1, bytes_per_sample)
    cap = min(batch,
              max(1, target_bytes // bps),
              max(1, x_budget_bytes // (4 * bps)))
    if batch >= min_steps:
        cap = min(cap, max(1, batch // min_steps))
    cap = max(1, cap)
    divisors = [d for d in range(1, cap + 1) if batch % d == 0]
    even = [d for d in divisors if (batch // d) % 2 == 0]
    return max(even) if even else max(divisors)


def _pick_hw_block(hw, per_lane_bytes, x_budget_bytes, target_bytes=8 << 20):
    """Largest multiple of 128 dividing hw that keeps ~4x the tile within the
    VMEM budget (split fallback path only)."""
    cap = min(hw,
              max(128, target_bytes // max(1, per_lane_bytes)),
              max(128, x_budget_bytes // (4 * max(1, per_lane_bytes))))
    best, t = 128, 128
    while t <= cap:
        if hw % t == 0:
            best = t
        t += 128
    return best


def _rep_spec(shape, grid_rank):
    nd = len(shape)
    if grid_rank == 1:
        return pl.BlockSpec(shape, lambda b, _nd=nd: (0,) * _nd)
    return pl.BlockSpec(shape, lambda b, h, _nd=nd: (0,) * _nd)


# ---------------------------------------------------------------------------
# Wrapper
# ---------------------------------------------------------------------------

def sams_forward(x, params, *, radix, channels, block_b=None, hw_block=None,
                 force_split=False):
    B, C, H, W = x.shape
    assert C == radix * channels, "expects channels == in_channels // radix"
    HW = H * W
    itemsize = x.dtype.itemsize

    # Lane-dense layout: wrapper-side reshape is a free layout change.
    # NOTE: if HW % 128 != 0 the stores are masked; a (B, HW, C) layout would
    # fix it but a wrapper-side NCHW transpose is not free, so keep as-is.
    x2 = x.reshape(B, C, HW)

    # Fold eval-mode BatchNorm into fc1's weight/bias.
    w1_eff = params["w1"] * params["scale"]
    b1_eff = params["b1"] * params["scale"] + params["shift"]
    w2, b2 = params["w2"], params["b2"]
    inter = w1_eff.shape[1]

    vmem_limit = _vmem_limit_bytes()
    x_budget = int(vmem_limit * 0.70)        # headroom for weights + scratch
    sample_bytes = C * HW * itemsize
    cparams = dict(vmem_limit_bytes=vmem_limit)

    use_split = force_split or (4 * sample_bytes > x_budget)
    if use_split and HW % 128 == 0:
        # ---- fallback: two-pass att-then-apply, tiling the spatial axis ----
        hw_t = hw_block or _pick_hw_block(HW, C * itemsize, x_budget)
        bb = block_b or _pick_block_b(B, C * hw_t * itemsize, x_budget)
        grid = (B // bb, HW // hw_t)

        x_spec = pl.BlockSpec((bb, C, hw_t), lambda b, h: (b, 0, h))
        att_spec = pl.BlockSpec((bb, C, 1), lambda b, h: (b, 0, 0))
        w_specs = [_rep_spec((channels, inter), 2), _rep_spec((1, inter), 2),
                   _rep_spec((inter, C), 2), _rep_spec((1, C), 2)]

        att = pl.pallas_call(
            partial(sams_att_kernel, radix=radix, channels=channels,
                    hw_total=HW),
            out_shape=jax.ShapeDtypeStruct((B, C, 1), x.dtype),
            grid_spec=pltpu.PrefetchScalarGridSpec(
                num_scalar_prefetch=0,
                grid=grid,
                in_specs=[x_spec] + w_specs,
                out_specs=att_spec,
                scratch_shapes=[pltpu.VMEM((bb, C), jnp.float32)]),
            compiler_params=pltpu.CompilerParams(
                dimension_semantics=("parallel", "arbitrary"), **cparams),
        )(x2, w1_eff, b1_eff, w2, b2)

        out = pl.pallas_call(
            sams_apply_kernel,
            out_shape=jax.ShapeDtypeStruct((B, C, HW), x.dtype),
            grid_spec=pltpu.PrefetchScalarGridSpec(
                num_scalar_prefetch=0,
                grid=grid,
                in_specs=[att_spec, x_spec],
                out_specs=x_spec),
            compiler_params=pltpu.CompilerParams(
                dimension_semantics=("parallel", "parallel"), **cparams),
        )(att, x2)
        return out.reshape(B, C, H, W)

    # ---------------------- default: single fused pass ---------------------
    # TODO(synk): shapes where one sample overflows the VMEM budget AND
    # HW % 128 != 0 fall through here (the compiler may drop double-buffering).
    bb = block_b or _pick_block_b(B, sample_bytes, x_budget)
    x_spec = pl.BlockSpec((bb, C, HW), lambda b: (b, 0, 0))
    w_specs = [_rep_spec((channels, inter), 1), _rep_spec((1, inter), 1),
               _rep_spec((inter, C), 1), _rep_spec((1, C), 1)]

    out = pl.pallas_call(
        partial(sams_fused_kernel, radix=radix, channels=channels),
        out_shape=jax.ShapeDtypeStruct((B, C, HW), x.dtype),
        grid_spec=pltpu.PrefetchScalarGridSpec(
            num_scalar_prefetch=0,
            grid=(B // bb,),
            in_specs=[x_spec] + w_specs,
            out_specs=x_spec),
        compiler_params=pltpu.CompilerParams(
            dimension_semantics=("parallel",), **cparams),
    )(x2, w1_eff, b1_eff, w2, b2)
    return out.reshape(B, C, H, W)


def sams_reference(x, params, *, radix, channels):
    """Pure-JAX reference for correctness checking."""
    B, C, H, W = x.shape
    xs = x.reshape(B, radix, channels, H, W)
    gap = jnp.mean(jnp.sum(xs, axis=1), axis=(2, 3))            # (B, channels)
    h = gap @ params["w1"] + params["b1"]
    h = h * params["scale"] + params["shift"]
    h = jnp.maximum(h, 0.0)
    logits = (h @ params["w2"] + params["b2"]).reshape(B, radix, channels)
    att = jax.nn.softmax(logits, axis=1)
    return (xs * att[:, :, :, None, None]).reshape(B, C, H, W)


if __name__ == "__main__":
    # Small shapes consistent with the module: channels == in_channels // radix.
    B, H, W = 4, 16, 16
    radix, channels = 4, 4
    C = radix * channels                               # 16
    reduction_factor = 4
    inter = max(C * radix // reduction_factor, 32)     # 32

    key = jax.random.PRNGKey(0)
    kx, k1, kb1, k2, kb2, kg, kb = jax.random.split(key, 7)

    x = jax.random.normal(kx, (B, C, H, W), jnp.float32)

    # fc1: Conv2d(channels, inter, 1) -> weight stored transposed (channels, inter).
    w1 = 0.1 * jax.random.normal(k1, (channels, inter), jnp.float32)
    b1 = 0.1 * jax.random.normal(kb1, (1, inter), jnp.float32)
    # fc2: Conv2d(inter, channels * radix, 1) -> stored transposed.
    w2 = 0.1 * jax.random.normal(k2, (inter, radix * channels), jnp.float32)
    b2 = 0.1 * jax.random.normal(kb2, (1, radix * channels), jnp.float32)

    # BatchNorm2d(inter) in eval mode, expressed as scale/shift.
    gamma = 1.0 + 0.1 * jax.random.normal(kg, (1, inter), jnp.float32)
    beta = 0.1 * jax.random.normal(kb, (1, inter), jnp.float32)
    running_mean = jnp.zeros((1, inter), jnp.float32)
    running_var = jnp.ones((1, inter), jnp.float32)
    eps = 1e-5
    scale = gamma / jnp.sqrt(running_var + eps)
    shift = beta - running_mean * scale

    params = dict(w1=w1, b1=b1, scale=scale, shift=shift, w2=w2, b2=b2)

    ref = sams_reference(x, params, radix=radix, channels=channels)

    # Default (fused single-pass) path.
    out = jax.block_until_ready(
        sams_forward(x, params, radix=radix, channels=channels))
    assert out.shape == (B, C, H, W)
    assert jnp.allclose(out, ref, atol=2e-3, rtol=2e-3), \
        float(jnp.max(jnp.abs(out - ref)))

    # Fallback (two-pass, spatial-tiled) path, forced at small shapes so it is
    # exercised too.
    out2 = jax.block_until_ready(
        sams_forward(x, params, radix=radix, channels=channels,
                     force_split=True, hw_block=128))
    assert jnp.allclose(out2, ref, atol=2e-3, rtol=2e-3), \
        float(jnp.max(jnp.abs(out2 - ref)))

    print("KERNEL_OK")
</pallas_src>

<mosaic_0001>
module attributes {stable_mosaic.version = 11 : i64} {
  func.func @sams_fused_kernel(%arg0: i32, %arg1: memref<1x16x256xf32, #tpu.memory_space<vmem>>, %arg2: memref<4x32xf32, #tpu.memory_space<vmem>>, %arg3: memref<1x32xf32, #tpu.memory_space<vmem>>, %arg4: memref<32x16xf32, #tpu.memory_space<vmem>>, %arg5: memref<1x16xf32, #tpu.memory_space<vmem>>, %arg6: memref<1x16x256xf32, #tpu.memory_space<vmem>>) attributes {dimension_semantics = [#tpu.dimension_semantics<parallel>], iteration_bounds = array<i64: 4>, scalar_prefetch = 0 : i64, scratch_operands = 0 : i64, tpu.core_type = #tpu.core_type<tc>, window_params = [{transform_indices = @transform_0, window_bounds = array<i64: 1, 16, 256>}, {pipeline_mode = #tpu.pipeline_mode<synchronous>, transform_indices = @transform_1, window_bounds = array<i64: 4, 32>}, {pipeline_mode = #tpu.pipeline_mode<synchronous>, transform_indices = @transform_2, window_bounds = array<i64: 1, 32>}, {pipeline_mode = #tpu.pipeline_mode<synchronous>, transform_indices = @transform_3, window_bounds = array<i64: 32, 16>}, {pipeline_mode = #tpu.pipeline_mode<synchronous>, transform_indices = @transform_4, window_bounds = array<i64: 1, 16>}, {transform_indices = @transform_5, window_bounds = array<i64: 1, 16, 256>}]} {
    %c0 = arith.constant 0 : index
    %c0_0 = arith.constant 0 : index
    %c0_1 = arith.constant 0 : index
    %0 = vector.load %arg1[%c0, %c0_0, %c0_1] : memref<1x16x256xf32, #tpu.memory_space<vmem>>, vector<1x16x256xf32>
    %cst = arith.constant dense<0.000000e+00> : vector<1x16xf32>
    %1 = vector.multi_reduction <add>, %0, %cst [2] : vector<1x16x256xf32> to vector<1x16xf32>
    %cst_2 = arith.constant 3.906250e-03 : f32
    %2 = vector.broadcast %cst_2 : f32 to vector<1x16xf32>
    %3 = arith.mulf %1, %2 : vector<1x16xf32>
    %4 = vector.extract_strided_slice %3 {offsets = [0, 0], sizes = [1, 4], strides = [1, 1]} : vector<1x16xf32> to vector<1x4xf32>
    %5 = vector.extract_strided_slice %3 {offsets = [0, 4], sizes = [1, 4], strides = [1, 1]} : vector<1x16xf32> to vector<1x4xf32>
    %6 = arith.addf %4, %5 : vector<1x4xf32>
    %7 = vector.extract_strided_slice %3 {offsets = [0, 8], sizes = [1, 4], strides = [1, 1]} : vector<1x16xf32> to vector<1x4xf32>
    %8 = arith.addf %6, %7 : vector<1x4xf32>
    %9 = vector.extract_strided_slice %3 {offsets = [0, 12], sizes = [1, 4], strides = [1, 1]} : vector<1x16xf32> to vector<1x4xf32>
    %10 = arith.addf %8, %9 : vector<1x4xf32>
    %c0_3 = arith.constant 0 : index
    %c0_4 = arith.constant 0 : index
    %11 = vector.load %arg2[%c0_3, %c0_4] : memref<4x32xf32, #tpu.memory_space<vmem>>, vector<4x32xf32>
    %cst_5 = arith.constant dense<0.000000e+00> : vector<1x32xf32>
    %12 = tpu.matmul %10, %11, %cst_5 {dimension_numbers = #tpu.dot_dimension_numbers<[1], [0], [0], [1], [0, 0, 1, 1], [], []>} : vector<1x4xf32>, vector<4x32xf32>, vector<1x32xf32> -> vector<1x32xf32>
    %c0_6 = arith.constant 0 : index
    %c0_7 = arith.constant 0 : index
    %13 = vector.load %arg3[%c0_6, %c0_7] : memref<1x32xf32, #tpu.memory_space<vmem>>, vector<1x32xf32>
    %14 = arith.addf %12, %13 : vector<1x32xf32>
    %cst_8 = arith.constant 0.000000e+00 : f32
    %15 = vector.broadcast %cst_8 : f32 to vector<1x32xf32>
    %16 = arith.maximumf %14, %15 : vector<1x32xf32>
    %c0_9 = arith.constant 0 : index
    %c0_10 = arith.constant 0 : index
    %17 = vector.load %arg4[%c0_9, %c0_10] : memref<32x16xf32, #tpu.memory_space<vmem>>, vector<32x16xf32>
    %cst_11 = arith.constant dense<0.000000e+00> : vector<1x16xf32>
    %18 = tpu.matmul %16, %17, %cst_11 {dimension_numbers = #tpu.dot_dimension_numbers<[1], [0], [0], [1], [0, 0, 1, 1], [], []>} : vector<1x32xf32>, vector<32x16xf32>, vector<1x16xf32> -> vector<1x16xf32>
    %c0_12 = arith.constant 0 : index
    %c0_13 = arith.constant 0 : index
    %19 = vector.load %arg5[%c0_12, %c0_13] : memref<1x16xf32, #tpu.memory_space<vmem>>, vector<1x16xf32>
    %20 = arith.addf %18, %19 : vector<1x16xf32>
    %21 = vector.extract_strided_slice %20 {offsets = [0, 0], sizes = [1, 4], strides = [1, 1]} : vector<1x16xf32> to vector<1x4xf32>
    %22 = vector.extract_strided_slice %20 {offsets = [0, 4], sizes = [1, 4], strides = [1, 1]} : vector<1x16xf32> to vector<1x4xf32>
    %23 = vector.extract_strided_slice %20 {offsets = [0, 8], sizes = [1, 4], strides = [1, 1]} : vector<1x16xf32> to vector<1x4xf32>
    %24 = vector.extract_strided_slice %20 {offsets = [0, 12], sizes = [1, 4], strides = [1, 1]} : vector<1x16xf32> to vector<1x4xf32>
    %25 = arith.maximumf %21, %22 : vector<1x4xf32>
    %26 = arith.maximumf %25, %23 : vector<1x4xf32>
    %27 = arith.maximumf %26, %24 : vector<1x4xf32>
    %28 = arith.subf %21, %27 : vector<1x4xf32>
    %29 = math.exp %28 : vector<1x4xf32>
    %30 = arith.subf %22, %27 : vector<1x4xf32>
    %31 = math.exp %30 : vector<1x4xf32>
    %32 = arith.subf %23, %27 : vector<1x4xf32>
    %33 = math.exp %32 : vector<1x4xf32>
    %34 = arith.subf %24, %27 : vector<1x4xf32>
    %35 = math.exp %34 : vector<1x4xf32>
    %36 = arith.addf %29, %31 : vector<1x4xf32>
    %37 = arith.addf %36, %33 : vector<1x4xf32>
    %38 = arith.addf %37, %35 : vector<1x4xf32>
    %cst_14 = arith.constant 1.000000e+00 : f32
    %39 = vector.broadcast %cst_14 : f32 to vector<1x4xf32>
    %40 = arith.divf %39, %38 : vector<1x4xf32>
    %41 = arith.mulf %29, %40 : vector<1x4xf32>
    %42 = arith.mulf %31, %40 : vector<1x4xf32>
    %43 = arith.mulf %33, %40 : vector<1x4xf32>
    %44 = arith.mulf %35, %40 : vector<1x4xf32>
    %45 = tpu.concatenate %41, %42, %43, %44 in 1 : vector<1x4xf32>, vector<1x4xf32>, vector<1x4xf32>, vector<1x4xf32> -> vector<1x16xf32>
    %c0_15 = arith.constant 0 : index
    %c0_16 = arith.constant 0 : index
    %c0_17 = arith.constant 0 : index
    %46 = vector.load %arg1[%c0_15, %c0_16, %c0_17] : memref<1x16x256xf32, #tpu.memory_space<vmem>>, vector<1x16x256xf32>
    %47 = vector.shape_cast %45 : vector<1x16xf32> to vector<1x16x1xf32>
    %48 = vector.broadcast %47 : vector<1x16x1xf32> to vector<1x16x256xf32>
    %49 = arith.mulf %46, %48 : vector<1x16x256xf32>
    %c0_18 = arith.constant 0 : index
    %c0_19 = arith.constant 0 : index
    %c0_20 = arith.constant 0 : index
    %50 = vector.load %arg6[%c0_18, %c0_19, %c0_20] : memref<1x16x256xf32, #tpu.memory_space<vmem>>, vector<1x16x256xf32>
    tpu.vector_store %arg6[%c0_18, %c0_19, %c0_20], %49 {strides = array<i32>} : memref<1x16x256xf32, #tpu.memory_space<vmem>>, vector<1x16x256xf32>,
    return
  }
  func.func @transform_0(%arg0: i32) -> (i32, i32, i32) {
    %c0_i32 = arith.constant 0 : i32
    %c0_i32_0 = arith.constant 0 : i32
    %c0_i32_1 = arith.constant 0 : i32
    return %arg0, %c0_i32, %c0_i32_0 : i32, i32, i32
  }
  func.func @transform_1(%arg0: i32) -> (i32, i32) {
    %c0_i32 = arith.constant 0 : i32
    %c0_i32_0 = arith.constant 0 : i32
    %c0_i32_1 = arith.constant 0 : i32
    return %c0_i32, %c0_i32_0 : i32, i32
  }
  func.func @transform_2(%arg0: i32) -> (i32, i32) {
    %c0_i32 = arith.constant 0 : i32
    %c0_i32_0 = arith.constant 0 : i32
    %c0_i32_1 = arith.constant 0 : i32
    return %c0_i32, %c0_i32_0 : i32, i32
  }
  func.func @transform_3(%arg0: i32) -> (i32, i32) {
    %c0_i32 = arith.constant 0 : i32
    %c0_i32_0 = arith.constant 0 : i32
    %c0_i32_1 = arith.constant 0 : i32
    return %c0_i32, %c0_i32_0 : i32, i32
  }
  func.func @transform_4(%arg0: i32) -> (i32, i32) {
    %c0_i32 = arith.constant 0 : i32
    %c0_i32_0 = arith.constant 0 : i32
    %c0_i32_1 = arith.constant 0 : i32
    return %c0_i32, %c0_i32_0 : i32, i32
  }
  func.func @transform_5(%arg0: i32) -> (i32, i32, i32) {
    %c0_i32 = arith.constant 0 : i32
    %c0_i32_0 = arith.constant 0 : i32
    %c0_i32_1 = arith.constant 0 : i32
    return %arg0, %c0_i32, %c0_i32_0 : i32, i32, i32
  }
}

</mosaic_0001>

<llo_original>
// kernel: tpu_custom_call.1
$region0: #{tpu_custom_call.1}
  #allocation0 [shape = 'u32[]', space=smem, size = 0x4, offset = 0x4, fixed_abs, tag = 'smem constant byte address 0x4 - core index']
  #allocation1 [shape = 'u32[144,128]{1,0:T(1,128)}', space=vmem, size = 0x12000, scoped, tag = 'internal scratch']
  %s0 = inlined_call_operand.hbm [shape: f32[4,16,256], index: 0, kind: input, shape index: {}]
  %s1 = inlined_call_operand.vmem [shape: f32[4,32], index: 1, kind: input, shape index: {}]
  %s2 = inlined_call_operand.vmem [shape: f32[1,32], index: 2, kind: input, shape index: {}]
  %s3 = inlined_call_operand.vmem [shape: f32[32,16], index: 3, kind: input, shape index: {}]
  %s4 = inlined_call_operand.vmem [shape: f32[1,16], index: 4, kind: input, shape index: {}]
  %s5 = inlined_call_operand.hbm [shape: f32[4,16,256], index: 5, kind: output, shape index: {}]
  %s6 = sld [smem:[#allocation0]]
  $region57: #{tpu_custom_call.1} parent=0
    _
  %s8 = ssub.s32 1, %s6
  %s9 = scalar_select 0, %s8, %s6
  $region1: #{tpu_custom_call.1} parent=0
    #allocation2 [shape = 'u8[32768]{0}', space=vmem, size = 0x8000, scoped, tag = 'input window, operand 0']
    #allocation3 [shape = 's32[2]{0}', space=sflag, size = 0x8, scoped, tag = 'scoped memory for tpu_custom_call.1']
    #allocation4 [shape = 's32[2]{0}', space=sflag, size = 0x8, scoped, tag = 'scoped memory for tpu_custom_call.1']
    #allocation5 [shape = 'u8[32768]{0}', space=vmem, size = 0x8000, scoped, tag = 'output window, operand 0']
    %10 = vsyncpa [#allocation3], 0
    %s11 = scalar_lea.sflag [#allocation3], 1
    %12 = vsyncpa %s11, 0
    %13 = vsyncpa [#allocation4], 0
    %s14 = scalar_lea.sflag [#allocation4], 1
    %15 = vsyncpa %s14, 0
    loop: start=0, step=1, limit=6
    $region2: #{tpu_custom_call.1} parent=1 // loop_pre_header
      _
    $region3: #{tpu_custom_call.1} parent=1 // loop_header
      %s17 = sphi 0, %s21
      %p18 = scmp.ge.s32.totalorder %s17, 6
      %s27 = sphi 0, %s29
      %s30 = sphi 0, %s27
      %s31 = sphi 0, %s30
      %s47 = sphi 0, %s31
      %s51 = sphi 0, %s51
      %s53 = sphi 0, %s51
      %s54 = sphi 0, %s53
      %s68 = sphi 0, %s54
      %s72 = sphi 0, %s72
      %s74 = sphi 0, %s72
      %s75 = sphi 0, %s74
      %s89 = sphi 0, %s75
      %s93 = sphi 0, %s93
      %s95 = sphi 0, %s93
      %s96 = sphi 0, %s95
      %s110 = sphi 0, %s96
      %s114 = sphi 0, %s114
      %s116 = sphi 0, %s114
      %s117 = sphi 0, %s116
      %s131 = sphi 0, %s117
      %s137 = sphi 0, %s139
      %s140 = sphi 0, %s137
      %s141 = sphi 0, %s140
      %s157 = sphi 0, %s141
    $region4: #{tpu_custom_call.1} parent=1 // loop_header_branch
      %20 = sbr.rel (%p18) target = $region8
    $region5: #{tpu_custom_call.1} parent=1 // loop_body
      %s22 = ssub.s32 %s17, 1
      %s23 = ssub.s32 %s17, 2
      %s24 = sadd.s32 %s17, 1
      %s25 = ssub.s32 %s17, %s24
      %p26 = scmp.eq.s32.totalorder %s25, 0
      %s28 = sadd.s32 %s27, 1
      %s29 = scalar_select %p26, %s27, %s28
      %p32 = pneg %p26
      %p33 = scmp.eq.s32.totalorder %s17, 3
      %p34 = por %p32, %p33
      %p35 = scmp.ne.s32.totalorder %s27, %s30
      %p36 = scmp.eq.s32.totalorder %s17, 0
      %p37 = por %p35, %p36
      %p38 = scmp.ne.s32.totalorder %s27, %s30
      %p39 = scmp.eq.s32.totalorder %s22, 3
      %p40 = por %p38, %p39
      %p41 = scmp.ne.s32.totalorder %s30, %s31
      %p42 = scmp.eq.s32.totalorder %s22, 0
      %p43 = por %p41, %p42
      %p44 = scmp.ne.s32.totalorder %s30, %s31
      %p45 = scmp.eq.s32.totalorder %s23, 3
      %p46 = por %p44, %p45
      %p48 = scmp.ne.s32.totalorder %s31, %s47
      %p49 = scmp.eq.s32.totalorder %s23, 0
      %p50 = por %p48, %p49
      %s52 = sadd.s32 %s51, 1
      %p55 = scmp.eq.s32.totalorder %s17, 3
      %p56 = scmp.ne.s32.totalorder %s51, %s53
      %p57 = scmp.eq.s32.totalorder %s17, 0
      %p58 = por %p56, %p57
      %p59 = scmp.ne.s32.totalorder %s51, %s53
      %p60 = scmp.eq.s32.totalorder %s22, 3
      %p61 = por %p59, %p60
      %p62 = scmp.ne.s32.totalorder %s53, %s54
      %p63 = scmp.eq.s32.totalorder %s22, 0
      %p64 = por %p62, %p63
      %p65 = scmp.ne.s32.totalorder %s53, %s54
      %p66 = scmp.eq.s32.totalorder %s23, 3
      %p67 = por %p65, %p66
      %p69 = scmp.ne.s32.totalorder %s54, %s68
      %p70 = scmp.eq.s32.totalorder %s23, 0
      %p71 = por %p69, %p70
      %s73 = sadd.s32 %s72, 1
      %p76 = scmp.eq.s32.totalorder %s17, 3
      %p77 = scmp.ne.s32.totalorder %s72, %s74
      %p78 = scmp.eq.s32.totalorder %s17, 0
      %p79 = por %p77, %p78
      %p80 = scmp.ne.s32.totalorder %s72, %s74
      %p81 = scmp.eq.s32.totalorder %s22, 3
      %p82 = por %p80, %p81
      %p83 = scmp.ne.s32.totalorder %s74, %s75
      %p84 = scmp.eq.s32.totalorder %s22, 0
      %p85 = por %p83, %p84
      %p86 = scmp.ne.s32.totalorder %s74, %s75
      %p87 = scmp.eq.s32.totalorder %s23, 3
      %p88 = por %p86, %p87
      %p90 = scmp.ne.s32.totalorder %s75, %s89
      %p91 = scmp.eq.s32.totalorder %s23, 0
      %p92 = por %p90, %p91
      %s94 = sadd.s32 %s93, 1
      %p97 = scmp.eq.s32.totalorder %s17, 3
      %p98 = scmp.ne.s32.totalorder %s93, %s95
      %p99 = scmp.eq.s32.totalorder %s17, 0
      %p100 = por %p98, %p99
      %p101 = scmp.ne.s32.totalorder %s93, %s95
      %p102 = scmp.eq.s32.totalorder %s22, 3
      %p103 = por %p101, %p102
      %p104 = scmp.ne.s32.totalorder %s95, %s96
      %p105 = scmp.eq.s32.totalorder %s22, 0
      %p106 = por %p104, %p105
      %p107 = scmp.ne.s32.totalorder %s95, %s96
      %p108 = scmp.eq.s32.totalorder %s23, 3
      %p109 = por %p107, %p108
      %p111 = scmp.ne.s32.totalorder %s96, %s110
      %p112 = scmp.eq.s32.totalorder %s23, 0
      %p113 = por %p111, %p112
      %s115 = sadd.s32 %s114, 1
      %p118 = scmp.eq.s32.totalorder %s17, 3
      %p119 = scmp.ne.s32.totalorder %s114, %s116
      %p120 = scmp.eq.s32.totalorder %s17, 0
      %p121 = por %p119, %p120
      %p122 = scmp.ne.s32.totalorder %s114, %s116
      %p123 = scmp.eq.s32.totalorder %s22, 3
      %p124 = por %p122, %p123
      %p125 = scmp.ne.s32.totalorder %s116, %s117
      %p126 = scmp.eq.s32.totalorder %s22, 0
      %p127 = por %p125, %p126
      %p128 = scmp.ne.s32.totalorder %s116, %s117
      %p129 = scmp.eq.s32.totalorder %s23, 3
      %p130 = por %p128, %p129
      %p132 = scmp.ne.s32.totalorder %s117, %s131
      %p133 = scmp.eq.s32.totalorder %s23, 0
      %p134 = por %p132, %p133
      %s135 = ssub.s32 %s17, %s24
      %p136 = scmp.eq.s32.totalorder %s135, 0
      %s138 = sadd.s32 %s137, 1
      %s139 = scalar_select %p136, %s137, %s138
      %p142 = pneg %p136
      %p143 = scmp.eq.s32.totalorder %s17, 3
      %p144 = por %p142, %p143
      %p145 = scmp.ne.s32.totalorder %s137, %s140
      %p146 = scmp.eq.s32.totalorder %s17, 0
      %p147 = por %p145, %p146
      %p148 = scmp.ne.s32.totalorder %s137, %s140
      %p149 = scmp.eq.s32.totalorder %s22, 3
      %p150 = por %p148, %p149
      %p151 = scmp.ne.s32.totalorder %s140, %s141
      %p152 = scmp.eq.s32.totalorder %s22, 0
      %p153 = por %p151, %p152
      %p154 = scmp.ne.s32.totalorder %s140, %s141
      %p155 = scmp.eq.s32.totalorder %s23, 3
      %p156 = por %p154, %p155
      %p158 = scmp.ne.s32.totalorder %s141, %s157
      %p159 = scmp.eq.s32.totalorder %s23, 0
      %p160 = por %p158, %p159
      %p161 = scmp.le.s32.totalorder 1, %s17
      %p162 = scmp.lt.s32.totalorder %s17, 5
      %p163 = pnand %p161, %p162
      %p164 = pneg %p163
      // Predicated region
      $region9: #{tpu_custom_call.1} parent=5 // pred_check
        _
      $region10: #{tpu_custom_call.1} parent=5 // pred_check_branch
        %166 = sbr.rel (%p163) target = $region12
      $region11: #{tpu_custom_call.1} parent=5 // pred_region
        %s167 = ssub.s32 %s17, 1
        // Predicated region
        $region13: #{tpu_custom_call.1} parent=11 // pred_check
          %p168 = pneg %p64
        $region14: #{tpu_custom_call.1} parent=11 // pred_check_branch
          %170 = sbr.rel (%p168) target = $region16
        $region15: #{tpu_custom_call.1} parent=11 // pred_region
          _
        $region16: #{tpu_custom_call.1} parent=11 // pred_fallthru
          _
        // Predicated region
        $region17: #{tpu_custom_call.1} parent=11 // pred_check
          %p171 = pneg %p85
        $region18: #{tpu_custom_call.1} parent=11 // pred_check_branch
          %173 = sbr.rel (%p171) target = $region20
        $region19: #{tpu_custom_call.1} parent=11 // pred_region
          _
        $region20: #{tpu_custom_call.1} parent=11 // pred_fallthru
          _
        // Predicated region
        $region21: #{tpu_custom_call.1} parent=11 // pred_check
          %p174 = pneg %p106
        $region22: #{tpu_custom_call.1} parent=11 // pred_check_branch
          %176 = sbr.rel (%p174) target = $region24
        $region23: #{tpu_custom_call.1} parent=11 // pred_region
          _
        $region24: #{tpu_custom_call.1} parent=11 // pred_fallthru
          _
        // Predicated region
        $region25: #{tpu_custom_call.1} parent=11 // pred_check
          %p177 = pneg %p127
        $region26: #{tpu_custom_call.1} parent=11 // pred_check_branch
          %179 = sbr.rel (%p177) target = $region28
        $region27: #{tpu_custom_call.1} parent=11 // pred_region
          _
        $region28: #{tpu_custom_call.1} parent=11 // pred_fallthru
          _
      $region12: #{tpu_custom_call.1} parent=5 // pred_fallthru
        _
      %p180 = scmp.lt.s32.totalorder %s17, 4
      // Predicated region
      $region29: #{tpu_custom_call.1} parent=5 // pred_check
        %p181 = pneg %p180
      $region30: #{tpu_custom_call.1} parent=5 // pred_check_branch
        %183 = sbr.rel (%p181) target = $region32
      $region31: #{tpu_custom_call.1} parent=5 // pred_region
        // Predicated region
        $region33: #{tpu_custom_call.1} parent=31 // pred_check
          %p184 = pneg %p37
        $region34: #{tpu_custom_call.1} parent=31 // pred_check_branch
          %186 = sbr.rel (%p184) target = $region36
        $region35: #{tpu_custom_call.1} parent=31 // pred_region
          %s187 = sand.u32 %s27, 1
          %s188 = scalar_lea.sflag [#allocation3], %s187
          %s189 = sand.u32 %s27, 1
          %s190 = smul.addr %s189, 32
          %s191 = scalar_lea.vmem [#allocation2], %s190
          %s193 = ssub.s32 512, 512
          %194 = vsyncadd %s188, %s193
          %s195 = smul.addr %s17, 4
          %s196 = smul.addr %s195, 128
          %s197 = scalar_lea.hbm %s0, %s196
          %s198 = sshll.u32 %s191, 4
          %s199 = int_to_ptr.vmem [resolvable:$true] %s198
          %204 = dma.hbm_to_vmem [thread:$0]  %s197, 512, %s199, %s188, 256, 256, 16
        $region36: #{tpu_custom_call.1} parent=31 // pred_fallthru
          _
      $region32: #{tpu_custom_call.1} parent=5 // pred_fallthru
        _
      %p205 = scmp.le.s32.totalorder 1, %s17
      %p206 = scmp.lt.s32.totalorder %s17, 5
      %p207 = pnand %p205, %p206
      %p208 = pneg %p207
      // Predicated region
      $region37: #{tpu_custom_call.1} parent=5 // pred_check
        _
      $region38: #{tpu_custom_call.1} parent=5 // pred_check_branch
        %210 = sbr.rel (%p207) target = $region40
      $region39: #{tpu_custom_call.1} parent=5 // pred_region
        %s211 = ssub.s32 %s17, 1
        %s212 = sand.u32 %s30, 1
        %s213 = scalar_lea.sflag [#allocation3], %s212
        %s214 = sand.u32 %s30, 1
        %s215 = smul.addr %s214, 32
        %s216 = scalar_lea.vmem [#allocation2], %s215
        // Predicated region
        $region41: #{tpu_custom_call.1} parent=39 // pred_check
          %p217 = pneg %p43
        $region42: #{tpu_custom_call.1} parent=39 // pred_check_branch
          %219 = sbr.rel (%p217) target = $region44
        $region43: #{tpu_custom_call.1} parent=39 // pred_region
          %220 = dma.done %s213, 512
        $region44: #{tpu_custom_call.1} parent=39 // pred_fallthru
          _
        %s221 = sand.u32 %s30, 1
        %s222 = scalar_lea.sflag [#allocation3], %s221
        %s223 = sand.u32 %s30, 1
        %s224 = smul.addr %s223, 32
        %s225 = scalar_lea.vmem [#allocation2], %s224
        %p226 = pneg %p43
        %p227 = pneg %p40
        %p228 = pneg %p64
        %p229 = pneg %p61
        %p230 = pneg %p85
        %p231 = pneg %p82
        %p232 = pneg %p106
        %p233 = pneg %p103
        %p234 = pneg %p127
        %p235 = pneg %p124
        %p236 = pneg %p153
        %p237 = pneg %p150
        %s238 = sand.u32 %s140, 1
        %s239 = scalar_lea.sflag [#allocation4], %s238
        %s240 = sand.u32 %s140, 1
        %s241 = smul.addr %s240, 32
        %s242 = scalar_lea.vmem [#allocation5], %s241
        %v243 = vld [vmem:[%s216] sm:$0xff]
        %v244 = vld [vmem:[%s216 + $0x8] sm:$0xff]
        %v245 = vld [vmem:[%s216 + $0x10] sm:$0xff]
        %v246 = vld [vmem:[%s216 + $0x18] sm:$0xff]
        %v247 = vadd.f32 %v243, %v244
        %248 = vadd.xlane.f32.xlu0 %v247
        %v249 = vpop.xlane.xlu0 %248
        %v250 = vadd.f32 %v245, %v246
        %251 = vadd.xlane.f32.xlu0 %v250
        %v252 = vpop.xlane.xlu0 %251
        %v253 = vmul.f32 %v249, 0.00390625
        %v254 = vmul.f32 %v252, 0.00390625
        %v256 = vrot.slane %v253, 4
        %v258 = vadd.f32 %v253, %v256
        %v259 = vadd.f32 %v258, %v254
        %v261 = vrot.slane %v254, 4
        %v263 = vadd.f32 %v259, %v261
        %v264 = vld [vmem:[%s1] sm:$0xf]
        %v265 = vld [vmem:[%s2] sm:$0x1]
        %267 = vset.pattern.permute.xlu0 0
        %268 = vperm.xlu0 %267, %v263
        %v269 = vpop.permute.xlu0 %268
        %v270 = vlaneseq
        %v271 = vand.u32 %v270, 127
        %v272 = vlaneseq
        %v273 = vshrl.u32 %v272, 7
        %v274 = vsub.s32 %v271, %v273
        %v275 = vrot.slane %v269, %v274
        %vm276 = vcmask 31744
        %v277 = vsel %vm276, %v275, 0
        %vm279 = vcmask 1043456
        %v281 = vsel %vm279, %v264, 0
        %283 = vmatprep.subr.mxu0 0.0
        %284 = vmatpush1.msra.mxu0 0.0
        %285 = vmatprep.subr.mxu0 0.0
        %286 = vmatpush1.msra.mxu0 0.0
        %287 = vmatprep.subr.mxu0 0.0
        %288 = vmatpush1.msra.mxu0 0.0
        %289 = vmatprep.subr.mxu0 0.0
        %290 = vmatpush1.msra.mxu0 0.0
        %291 = vmatprep.subr.mxu0 0.0
        %292 = vmatpush1.msra.mxu0 0.0
        %293 = vmatprep.subr.mxu0 0.0
        %294 = vmatpush1.msra.mxu0 0.0
        %295 = vmatprep.subr.mxu0 0.0
        %296 = vmatpush1.msra.mxu0 0.0
        %297 = vmatprep.subr.mxu0 0.0
        %298 = vmatpush1.msra.mxu0 0.0
        %299 = vmatprep.subr.mxu0 0.0
        %300 = vmatpush1.msra.mxu0 0.0
        %301 = vmatprep.subr.mxu0 0.0
        %302 = vmatpush1.msra.mxu0 0.0
        %303 = vmatprep.subr.mxu0 0.0
        %304 = vmatpush1.msra.mxu0 0.0
        %305 = vmatprep.subr.mxu0 0.0
        %306 = vmatpush1.msra.mxu0 0.0
        %307 = vmatprep.subr.mxu0 0.0
        %308 = vmatpush1.msra.mxu0 0.0
        %309 = vmatprep.subr.mxu0 0.0
        %310 = vmatpush1.msra.mxu0 0.0
        %311 = vmatprep.subr.mxu0 0.0
        %312 = vmatpush1.msra.mxu0 0.0
        %313 = vmatprep.subr.mxu0 0.0
        %314 = vmatpush1.msra.mxu0 %v281
        %315 = vmatprep.subr.mxu0 0.0
        %316 = vmatpush2.msra.mxu0 0.0
        %317 = vmatprep.subr.mxu0 0.0
        %318 = vmatpush2.msra.mxu0 0.0
        %319 = vmatprep.subr.mxu0 0.0
        %320 = vmatpush2.msra.mxu0 0.0
        %321 = vmatprep.subr.mxu0 0.0
        %322 = vmatpush2.msra.mxu0 0.0
        %323 = vmatprep.subr.mxu0 0.0
        %324 = vmatpush2.msra.mxu0 0.0
        %325 = vmatprep.subr.mxu0 0.0
        %326 = vmatpush2.msra.mxu0 0.0
        %327 = vmatprep.subr.mxu0 0.0
        %328 = vmatpush2.msra.mxu0 0.0
        %329 = vmatprep.subr.mxu0 0.0
        %330 = vmatpush2.msra.mxu0 0.0
        %331 = vmatprep.subr.mxu0 0.0
        %332 = vmatpush2.msra.mxu0 0.0
        %333 = vmatprep.subr.mxu0 0.0
        %334 = vmatpush2.msra.mxu0 0.0
        %335 = vmatprep.subr.mxu0 0.0
        %336 = vmatpush2.msra.mxu0 0.0
        %337 = vmatprep.subr.mxu0 0.0
        %338 = vmatpush2.msra.mxu0 0.0
        %339 = vmatprep.subr.mxu0 0.0
        %340 = vmatpush2.msra.mxu0 0.0
        %341 = vmatprep.subr.mxu0 0.0
        %342 = vmatpush2.msra.mxu0 0.0
        %343 = vmatprep.subr.mxu0 0.0
        %344 = vmatpush2.msra.mxu0 0.0
        %345 = vmatprep.subr.mxu0 0.0
        %346 = vmatpush2.msra.mxu0 0.0
        %347 = vmatprep.mubr.f32.mxu0 0.0
        %348 = vmatmul.mubr.f32.gmra.mxu0 %v277
        %v349 = vpop.f32.mrf.mxu0
        %v350 = vadd.f32 %v265, %v349
        %v351 = vpop.f32.mrf.mxu0
        %352 = vdwg.mxu0
        %v353 = vmax.f32 %v350, 0.0
        %v354 = vld [vmem:[%s3] sm:$0xff]
        %v355 = vld [vmem:[%s3 + $0x8] sm:$0xff]
        %v356 = vld [vmem:[%s3 + $0x10] sm:$0xff]
        %v357 = vld [vmem:[%s3 + $0x18] sm:$0xff]
        %v358 = vld [vmem:[%s4] sm:$0x1]
        %vm359 = vcmask 261120
        %v361 = vsel %vm359, %v353, 0
        %363 = vmatprep.subr.mxu0 0.0
        %364 = vmatpush1.msra.mxu0 0.0
        %365 = vmatprep.subr.mxu0 0.0
        %366 = vmatpush1.msra.mxu0 0.0
        %367 = vmatprep.subr.mxu0 0.0
        %368 = vmatpush1.msra.mxu0 0.0
        %369 = vmatprep.subr.mxu0 0.0
        %370 = vmatpush1.msra.mxu0 0.0
        %371 = vmatprep.subr.mxu0 0.0
        %372 = vmatpush1.msra.mxu0 0.0
        %373 = vmatprep.subr.mxu0 0.0
        %374 = vmatpush1.msra.mxu0 0.0
        %375 = vmatprep.subr.mxu0 0.0
        %376 = vmatpush1.msra.mxu0 0.0
        %377 = vmatprep.subr.mxu0 0.0
        %378 = vmatpush1.msra.mxu0 0.0
        %379 = vmatprep.subr.mxu0 0.0
        %380 = vmatpush1.msra.mxu0 0.0
        %381 = vmatprep.subr.mxu0 0.0
        %382 = vmatpush1.msra.mxu0 0.0
        %383 = vmatprep.subr.mxu0 0.0
        %384 = vmatpush1.msra.mxu0 0.0
        %385 = vmatprep.subr.mxu0 0.0
        %386 = vmatpush1.msra.mxu0 0.0
        %387 = vmatprep.subr.mxu0 0.0
        %388 = vmatpush1.msra.mxu0 %v357
        %389 = vmatprep.subr.mxu0 0.0
        %390 = vmatpush1.msra.mxu0 %v356
        %391 = vmatprep.subr.mxu0 0.0
        %392 = vmatpush1.msra.mxu0 %v355
        %393 = vmatprep.subr.mxu0 0.0
        %394 = vmatpush1.msra.mxu0 %v354
        %395 = vmatprep.subr.mxu0 0.0
        %396 = vmatpush2.msra.mxu0 0.0
        %397 = vmatprep.subr.mxu0 0.0
        %398 = vmatpush2.msra.mxu0 0.0
        %399 = vmatprep.subr.mxu0 0.0
        %400 = vmatpush2.msra.mxu0 0.0
        %401 = vmatprep.subr.mxu0 0.0
        %402 = vmatpush2.msra.mxu0 0.0
        %403 = vmatprep.subr.mxu0 0.0
        %404 = vmatpush2.msra.mxu0 0.0
        %405 = vmatprep.subr.mxu0 0.0
        %406 = vmatpush2.msra.mxu0 0.0
        %407 = vmatprep.subr.mxu0 0.0
        %408 = vmatpush2.msra.mxu0 0.0
        %409 = vmatprep.subr.mxu0 0.0
        %410 = vmatpush2.msra.mxu0 0.0
        %411 = vmatprep.subr.mxu0 0.0
        %412 = vmatpush2.msra.mxu0 0.0
        %413 = vmatprep.subr.mxu0 0.0
        %414 = vmatpush2.msra.mxu0 0.0
        %415 = vmatprep.subr.mxu0 0.0
        %416 = vmatpush2.msra.mxu0 0.0
        %417 = vmatprep.subr.mxu0 0.0
        %418 = vmatpush2.msra.mxu0 0.0
        %419 = vmatprep.subr.mxu0 0.0
        %420 = vmatpush2.msra.mxu0 0.0
        %421 = vmatprep.subr.mxu0 0.0
        %422 = vmatpush2.msra.mxu0 0.0
        %423 = vmatprep.subr.mxu0 0.0
        %424 = vmatpush2.msra.mxu0 0.0
        %425 = vmatprep.subr.mxu0 0.0
        %426 = vmatpush2.msra.mxu0 0.0
        %427 = vmatprep.mubr.f32.mxu0 0.0
        %428 = vmatmul.mubr.f32.gmra.mxu0 %v361
        %v429 = vpop.f32.mrf.mxu0
        %v430 = vadd.f32 %v358, %v429
        %v431 = vpop.f32.mrf.mxu0
        %432 = vdwg.mxu0
        %434 = vrot.lane.b32.xlu0 %v430, 124
        %v435 = vpop.permute.xlu0 %434
        %v437 = vmax.f32 %v430, %v435
        %438 = vrot.lane.b32.xlu0 %v430, 120
        %v439 = vpop.permute.xlu0 %438
        %v441 = vmax.f32 %v437, %v439
        %442 = vrot.lane.b32.xlu0 %v430, 116
        %v443 = vpop.permute.xlu0 %442
        %v445 = vmax.f32 %v441, %v443
        %v446 = vsub.f32 %v430, %v445
        %v447 = vmul.f32 %v446, 1.442695
        %v448 = vpow.pop %v447
        %450 = vrot.lane.b32.xlu0 %v445, 4
        %v451 = vpop.permute.xlu0 %450
        %v453 = vsub.f32 %v430, %v451
        %v454 = vmul.f32 %v453, 1.442695
        %v455 = vpow.pop %v454
        %456 = vrot.lane.b32.xlu0 %v445, 8
        %v457 = vpop.permute.xlu0 %456
        %v459 = vsub.f32 %v430, %v457
        %v460 = vmul.f32 %v459, 1.442695
        %v461 = vpow.pop %v460
        %462 = vrot.lane.b32.xlu0 %v445, 12
        %v463 = vpop.permute.xlu0 %462
        %v465 = vsub.f32 %v430, %v463
        %v466 = vmul.f32 %v465, 1.442695
        %v467 = vpow.pop %v466
        %469 = vrot.lane.b32.xlu0 %v455, 124
        %v470 = vpop.permute.xlu0 %469
        %v472 = vadd.f32 %v448, %v470
        %474 = vrot.lane.b32.xlu0 %v461, 120
        %v475 = vpop.permute.xlu0 %474
        %v477 = vadd.f32 %v472, %v475
        %479 = vrot.lane.b32.xlu0 %v467, 116
        %v480 = vpop.permute.xlu0 %479
        %v482 = vadd.f32 %v477, %v480
        %v483 = vrcp.pop %v482
        %v484 = vmul.f32 1.0, %v483
        %v485 = vmul.f32 %v448, %v484
        %487 = vrot.lane.b32.xlu0 %v484, 4
        %v488 = vpop.permute.xlu0 %487
        %v490 = vmul.f32 %v455, %v488
        %491 = vrot.lane.b32.xlu0 %v484, 8
        %v492 = vpop.permute.xlu0 %491
        %v494 = vmul.f32 %v461, %v492
        %495 = vrot.lane.b32.xlu0 %v484, 12
        %v496 = vpop.permute.xlu0 %495
        %v498 = vmul.f32 %v467, %v496
        %v499 = vsel %vm276, %v485, %v490
        %vm500 = vcmask 64512
        %v501 = vsel %vm500, %v499, %v494
        %vm502 = vcmask 97280
        %v503 = vsel %vm502, %v501, %v498
        %v504 = vlaneseq
        %v505 = vshrl.u32 %v504, 7
        %v506 = vsub.s32 0, %v505
        %v507 = vrot.slane %v503, %v506
        %509 = vbcast.lane.b32.xlu0 %v507, 256
        %v510 = vpop.permute.xlu0 %509
        %s512 = sor.u32 256, 8
        %513 = vbcast.lane.b32.xlu0 %v507, %s512
        %v514 = vpop.permute.xlu0 %513
        %v515 = vmul.f32 %v243, %v510
        %v516 = vmul.f32 %v244, %v510
        %v517 = vmul.f32 %v245, %v514
        %v518 = vmul.f32 %v246, %v514
        %519 = vst [vmem:[%s242] sm:$0xff] %v515
        %520 = vst [vmem:[%s242 + $0x8] sm:$0xff] %v516
        %521 = vst [vmem:[%s242 + $0x10] sm:$0xff] %v517
        %522 = vst [vmem:[%s242 + $0x18] sm:$0xff] %v518
        %s523 = sand.u32 %s140, 1
        %s524 = scalar_lea.sflag [#allocation4], %s523
        %s525 = sand.u32 %s140, 1
        %s526 = smul.addr %s525, 32
        %s527 = scalar_lea.vmem [#allocation5], %s526
        // Predicated region
        $region45: #{tpu_custom_call.1} parent=39 // pred_check
          %p528 = pneg %p150
        $region46: #{tpu_custom_call.1} parent=39 // pred_check_branch
          %530 = sbr.rel (%p528) target = $region48
        $region47: #{tpu_custom_call.1} parent=39 // pred_region
          %s532 = ssub.s32 512, 512
          %533 = vsyncadd %s524, %s532
          %s534 = smul.addr %s22, 4
          %s535 = smul.addr %s534, 128
          %s536 = scalar_lea.hbm %s5, %s535
          %s537 = sshll.u32 %s527, 4
          %s538 = int_to_ptr.vmem [resolvable:$true] %s537
          %543 = dma.vmem_to_hbm [thread:$0]  %s538, 512, %s536, %s524, 256, 256, 16
        $region48: #{tpu_custom_call.1} parent=39 // pred_fallthru
          _
      $region40: #{tpu_custom_call.1} parent=5 // pred_fallthru
        _
      %p544 = scmp.le.s32.totalorder 2, %s17
      // Predicated region
      $region49: #{tpu_custom_call.1} parent=5 // pred_check
        %p545 = pneg %p544
      $region50: #{tpu_custom_call.1} parent=5 // pred_check_branch
        %547 = sbr.rel (%p545) target = $region52
      $region51: #{tpu_custom_call.1} parent=5 // pred_region
        %s548 = ssub.s32 %s17, 2
        // Predicated region
        $region53: #{tpu_custom_call.1} parent=51 // pred_check
          %p549 = pneg %p156
        $region54: #{tpu_custom_call.1} parent=51 // pred_check_branch
          %551 = sbr.rel (%p549) target = $region56
        $region55: #{tpu_custom_call.1} parent=51 // pred_region
          %s552 = sand.u32 %s141, 1
          %s553 = scalar_lea.sflag [#allocation4], %s552
          %s554 = sand.u32 %s141, 1
          %s555 = smul.addr %s554, 32
          %s556 = scalar_lea.vmem [#allocation5], %s555
          %557 = dma.done %s553, 512
        $region56: #{tpu_custom_call.1} parent=51 // pred_fallthru
          _
      $region52: #{tpu_custom_call.1} parent=5 // pred_fallthru
        _
    $region6: #{tpu_custom_call.1} parent=1 // loop_footer
      %s21 = sadd.s32 1, %s17
    $region7: #{tpu_custom_call.1} parent=1 // loop_footer_branch
      %16 = sbr.rel target = $region3
    $region8: #{tpu_custom_call.1} parent=1 // loop_exit
      _
    %558 = vsyncpa [#allocation3], 1
    %s559 = scalar_lea.sflag [#allocation3], 1
    %560 = vsyncpa %s559, 1
    %561 = vsyncpa [#allocation4], 1
    %s562 = scalar_lea.sflag [#allocation4], 1
    %563 = vsyncpa %s562, 1

</llo_original>
